<compile_context>
chip_gen: v5e
topology: v5e:2x2
jax: 0.10.0
libtpu: 0.0.40
codegen_flags: <defaults>
</compile_context>

<pallas_src>
import jax
import jax.numpy as jnp
from jax.experimental import pallas as pl
from jax.experimental.pallas import tpu as pltpu

# --- module constants (from the PyTorch source) ------------------------------
BSZ = 1
DIM_CATE_NEW = 19
DIM_COLOR = 17
DIM_GENDER = 2
DIM_SLEEVE = 4
DIM_H = 100
DIM_VOC = 539
NUM_LAYERS = 2
SEQ_LEN = 8  # small sequence length for the demo input

HP = 128                      # hidden dim padded to a full lane tile
VP = 640                      # dim_voc padded 539 -> 640 (multiple of 128)
HEAD_DIMS = (DIM_CATE_NEW, DIM_COLOR, DIM_GENDER, DIM_SLEEVE)
HEAD_TOTAL = sum(HEAD_DIMS)   # 42
OP = 128                      # fused-head logits padded to a full lane tile
OUT_W = HP + OP               # single lane-dense output: [ hn2 | head logits ]


# --- Pallas kernel ------------------------------------------------------------
def rnn_heads_kernel(x_ref,            # (T*B, VP)
                     wih0_ref,         # (VP, HP)
                     whh0_ref,         # (HP, HP)
                     b0_ref,           # (1, HP)   b_ih0 + b_hh0, padded
                     w1_ref,           # (2*HP, HP) stacked [Wih1^T ; Whh1^T]
                     b1_ref,           # (1, HP)   b_ih1 + b_hh1, padded
                     wh_ref,           # (HP, OP)  fused 4 heads
                     bh_ref,           # (1, OP)
                     out_ref):         # (B, OUT_W) lane-dense [hn2 | heads]
    TB = x_ref.shape[0]
    B = out_ref.shape[0]
    T = TB // B

    # ---- layer-0 input projection hoisted out of the serial chain:
    # one (T*B, VP) x (VP, HP) matmul with the folded bias.
    x0 = jnp.dot(x_ref[...], wih0_ref[...],
                 preferred_element_type=jnp.float32) + b0_ref[...]

    whh0 = whh0_ref[...]
    w1 = w1_ref[...]
    b1 = b1_ref[...]

    # ---- t = 0 peeled: both initial hidden states are exactly zero, so the
    # h @ Whh matmuls (and their adds) are skipped for free.
    h0 = jnp.tanh(x0[0:B, :])
    h1 = jnp.tanh(jnp.dot(h0, w1[:HP, :],
                          preferred_element_type=jnp.float32) + b1)

    # ---- wavefront: compute h1_t immediately after h0_t in the same unrolled
    # step (T is a compile-time constant -> LLO can overlap L1 MXU work under
    # later L0 steps).  Layer-1 is a single K=256 contraction per step.
    for t in range(1, T):
        h0 = jnp.tanh(x0[t * B:(t + 1) * B, :] +
                      jnp.dot(h0, whh0, preferred_element_type=jnp.float32))
        lhs = jnp.concatenate([h0, h1], axis=1)          # (B, 2*HP)
        h1 = jnp.tanh(jnp.dot(lhs, w1,
                              preferred_element_type=jnp.float32) + b1)

    # ---- fused heads + single lane-dense output write (one DMA).
    heads = jnp.dot(h1, wh_ref[...],
                    preferred_element_type=jnp.float32) + bh_ref[...]
    out_ref[...] = jnp.concatenate([h1, heads], axis=1)


# --- wrapper ------------------------------------------------------------------
def _pad_to(a, shape):
    return jnp.pad(a, [(0, s - d) for d, s in zip(a.shape, shape)])


def prepare_weights(params):
    """One-time weight prep (pad / transpose / fuse) — keep out of the per-call path."""
    H = DIM_H
    wih0 = _pad_to(params["w_ih0"].T, (VP, HP))                       # (640, 128)
    whh0 = _pad_to(params["w_hh0"].T, (HP, HP))                       # (128, 128)
    b0 = _pad_to((params["b_ih0"] + params["b_hh0"]).reshape(1, H), (1, HP))

    # layer-1: stack [Wih1^T ; Whh1^T] into one (256, 128) RHS so each
    # wavefront step is a single K=256 MXU contraction.
    wih1 = _pad_to(params["w_ih1"].T, (HP, HP))
    whh1 = _pad_to(params["w_hh1"].T, (HP, HP))
    w1 = jnp.concatenate([wih1, whh1], axis=0)                        # (256, 128)
    b1 = _pad_to((params["b_ih1"] + params["b_hh1"]).reshape(1, H), (1, HP))

    # 4 heads fused: concat [cate|color|gender|sleeve] -> (H, 42) -> pad (128, 128)
    w_heads = jnp.concatenate(
        [params["w_cate"].T, params["w_color"].T,
         params["w_gender"].T, params["w_sleeve"].T], axis=1)
    b_heads = jnp.concatenate(
        [params["b_cate"], params["b_color"],
         params["b_gender"], params["b_sleeve"]]).reshape(1, HEAD_TOTAL)
    wh = _pad_to(w_heads, (HP, OP))
    bh = _pad_to(b_heads, (1, OP))

    return tuple(jax.device_put(w) for w in (wih0, whh0, b0, w1, b1, wh, bh))


def define_network_forward(x, prepped):
    """x: (T, B, V) float32.  Returns (hn2, y_cate_new, y_color, y_gender, y_sleeve)."""
    T, B, V = x.shape
    xp = _pad_to(x.reshape(T * B, V), (T * B, VP))   # zero-pad K: 539 -> 640

    vmem_spec = pl.BlockSpec(memory_space=pltpu.MemorySpace.VMEM)
    out_p = pl.pallas_call(
        rnn_heads_kernel,
        out_shape=jax.ShapeDtypeStruct((B, OUT_W), jnp.float32),
        in_specs=[vmem_spec] * (1 + len(prepped)),
        out_specs=vmem_spec,
    )(xp, *prepped)

    hn2 = out_p[:, :DIM_H]
    o0 = HP + DIM_CATE_NEW
    o1 = o0 + DIM_COLOR
    o2 = o1 + DIM_GENDER
    o3 = o2 + DIM_SLEEVE
    y_cate = out_p[:, HP:o0]
    y_color = out_p[:, o0:o1]
    y_gender = out_p[:, o1:o2]
    y_sleeve = out_p[:, o2:o3]
    return hn2, y_cate, y_color, y_gender, y_sleeve


# --- pure-JAX reference (for correctness check only) --------------------------
def reference_forward(x, params):
    T, B, V = x.shape
    h0 = jnp.zeros((B, DIM_H), jnp.float32)
    h1 = jnp.zeros((B, DIM_H), jnp.float32)
    for t in range(T):
        xt = x[t]
        h0 = jnp.tanh(xt @ params["w_ih0"].T + params["b_ih0"]
                      + h0 @ params["w_hh0"].T + params["b_hh0"])
        h1 = jnp.tanh(h0 @ params["w_ih1"].T + params["b_ih1"]
                      + h1 @ params["w_hh1"].T + params["b_hh1"])
    hn2 = h1
    yc = hn2 @ params["w_cate"].T + params["b_cate"]
    yco = hn2 @ params["w_color"].T + params["b_color"]
    yg = hn2 @ params["w_gender"].T + params["b_gender"]
    ys = hn2 @ params["w_sleeve"].T + params["b_sleeve"]
    return hn2, yc, yco, yg, ys


def init_params(key):
    """Deterministic PyTorch-style uniform(-1/sqrt(fan_in)) init."""
    ks = jax.random.split(key, 16)
    k_rnn = 1.0 / jnp.sqrt(DIM_H)
    k_lin = 1.0 / jnp.sqrt(DIM_H)

    def u(k, shape, bound):
        return jax.random.uniform(k, shape, jnp.float32, -bound, bound)

    return {
        "w_ih0": u(ks[0], (DIM_H, DIM_VOC), k_rnn),
        "w_hh0": u(ks[1], (DIM_H, DIM_H), k_rnn),
        "b_ih0": u(ks[2], (DIM_H,), k_rnn),
        "b_hh0": u(ks[3], (DIM_H,), k_rnn),
        "w_ih1": u(ks[4], (DIM_H, DIM_H), k_rnn),
        "w_hh1": u(ks[5], (DIM_H, DIM_H), k_rnn),
        "b_ih1": u(ks[6], (DIM_H,), k_rnn),
        "b_hh1": u(ks[7], (DIM_H,), k_rnn),
        "w_cate": u(ks[8], (DIM_CATE_NEW, DIM_H), k_lin),
        "b_cate": u(ks[9], (DIM_CATE_NEW,), k_lin),
        "w_color": u(ks[10], (DIM_COLOR, DIM_H), k_lin),
        "b_color": u(ks[11], (DIM_COLOR,), k_lin),
        "w_gender": u(ks[12], (DIM_GENDER, DIM_H), k_lin),
        "b_gender": u(ks[13], (DIM_GENDER,), k_lin),
        "w_sleeve": u(ks[14], (DIM_SLEEVE, DIM_H), k_lin),
        "b_sleeve": u(ks[15], (DIM_SLEEVE,), k_lin),
    }


if __name__ == "__main__":
    root = jax.random.PRNGKey(0)
    k_x, k_p = jax.random.split(root)

    # input: (seq_len, batch, dim_voc) seq-first, matching nn.RNN default layout
    x = jax.random.normal(k_x, (SEQ_LEN, BSZ, DIM_VOC), jnp.float32)
    params = init_params(k_p)

    prepped = prepare_weights(params)           # one-time weight prep
    outs = define_network_forward(x, prepped)
    outs = jax.block_until_ready(outs)

    refs = reference_forward(x, params)
    for o, r in zip(outs, refs):
        assert o.shape == r.shape, (o.shape, r.shape)
        assert jnp.allclose(o, r, atol=1e-4, rtol=1e-4), float(jnp.max(jnp.abs(o - r)))

    print("KERNEL_OK")
</pallas_src>

<mosaic_0001>
module attributes {stable_mosaic.version = 11 : i64} {
  func.func @rnn_heads_kernel(%arg0: memref<8x640xf32, #tpu.memory_space<vmem>>, %arg1: memref<640x128xf32, #tpu.memory_space<vmem>>, %arg2: memref<128x128xf32, #tpu.memory_space<vmem>>, %arg3: memref<1x128xf32, #tpu.memory_space<vmem>>, %arg4: memref<256x128xf32, #tpu.memory_space<vmem>>, %arg5: memref<1x128xf32, #tpu.memory_space<vmem>>, %arg6: memref<128x128xf32, #tpu.memory_space<vmem>>, %arg7: memref<1x128xf32, #tpu.memory_space<vmem>>, %arg8: memref<1x256xf32, #tpu.memory_space<vmem>>) attributes {dimension_semantics = [], scalar_prefetch = 0 : i64, scratch_operands = 0 : i64, tpu.core_type = #tpu.core_type<tc>} {
    %c0 = arith.constant 0 : index
    %c0_0 = arith.constant 0 : index
    %0 = vector.load %arg0[%c0, %c0_0] : memref<8x640xf32, #tpu.memory_space<vmem>>, vector<8x640xf32>
    %c0_1 = arith.constant 0 : index
    %c0_2 = arith.constant 0 : index
    %1 = vector.load %arg1[%c0_1, %c0_2] : memref<640x128xf32, #tpu.memory_space<vmem>>, vector<640x128xf32>
    %cst = arith.constant dense<0.000000e+00> : vector<8x128xf32>
    %2 = tpu.matmul %0, %1, %cst {dimension_numbers = #tpu.dot_dimension_numbers<[1], [0], [0], [1], [0, 0, 1, 1], [], []>} : vector<8x640xf32>, vector<640x128xf32>, vector<8x128xf32> -> vector<8x128xf32>
    %c0_3 = arith.constant 0 : index
    %c0_4 = arith.constant 0 : index
    %3 = vector.load %arg3[%c0_3, %c0_4] : memref<1x128xf32, #tpu.memory_space<vmem>>, vector<1x128xf32>
    %4 = vector.broadcast %3 : vector<1x128xf32> to vector<8x128xf32>
    %5 = arith.addf %2, %4 : vector<8x128xf32>
    %c0_5 = arith.constant 0 : index
    %c0_6 = arith.constant 0 : index
    %6 = vector.load %arg2[%c0_5, %c0_6] : memref<128x128xf32, #tpu.memory_space<vmem>>, vector<128x128xf32>
    %c0_7 = arith.constant 0 : index
    %c0_8 = arith.constant 0 : index
    %7 = vector.load %arg4[%c0_7, %c0_8] : memref<256x128xf32, #tpu.memory_space<vmem>>, vector<256x128xf32>
    %c0_9 = arith.constant 0 : index
    %c0_10 = arith.constant 0 : index
    %8 = vector.load %arg5[%c0_9, %c0_10] : memref<1x128xf32, #tpu.memory_space<vmem>>, vector<1x128xf32>
    %9 = vector.extract_strided_slice %5 {offsets = [0, 0], sizes = [1, 128], strides = [1, 1]} : vector<8x128xf32> to vector<1x128xf32>
    %10 = math.tanh %9 : vector<1x128xf32>
    %11 = vector.extract_strided_slice %7 {offsets = [0, 0], sizes = [128, 128], strides = [1, 1]} : vector<256x128xf32> to vector<128x128xf32>
    %cst_11 = arith.constant dense<0.000000e+00> : vector<1x128xf32>
    %12 = tpu.matmul %10, %11, %cst_11 {dimension_numbers = #tpu.dot_dimension_numbers<[1], [0], [0], [1], [0, 0, 1, 1], [], []>} : vector<1x128xf32>, vector<128x128xf32>, vector<1x128xf32> -> vector<1x128xf32>
    %13 = arith.addf %12, %8 : vector<1x128xf32>
    %14 = math.tanh %13 : vector<1x128xf32>
    %15 = vector.extract_strided_slice %5 {offsets = [1, 0], sizes = [1, 128], strides = [1, 1]} : vector<8x128xf32> to vector<1x128xf32>
    %cst_12 = arith.constant dense<0.000000e+00> : vector<1x128xf32>
    %16 = tpu.matmul %10, %6, %cst_12 {dimension_numbers = #tpu.dot_dimension_numbers<[1], [0], [0], [1], [0, 0, 1, 1], [], []>} : vector<1x128xf32>, vector<128x128xf32>, vector<1x128xf32> -> vector<1x128xf32>
    %17 = arith.addf %15, %16 : vector<1x128xf32>
    %18 = math.tanh %17 : vector<1x128xf32>
    %19 = tpu.concatenate %18, %14 in 1 : vector<1x128xf32>, vector<1x128xf32> -> vector<1x256xf32>
    %cst_13 = arith.constant dense<0.000000e+00> : vector<1x128xf32>
    %20 = tpu.matmul %19, %7, %cst_13 {dimension_numbers = #tpu.dot_dimension_numbers<[1], [0], [0], [1], [0, 0, 1, 1], [], []>} : vector<1x256xf32>, vector<256x128xf32>, vector<1x128xf32> -> vector<1x128xf32>
    %21 = arith.addf %20, %8 : vector<1x128xf32>
    %22 = math.tanh %21 : vector<1x128xf32>
    %23 = vector.extract_strided_slice %5 {offsets = [2, 0], sizes = [1, 128], strides = [1, 1]} : vector<8x128xf32> to vector<1x128xf32>
    %cst_14 = arith.constant dense<0.000000e+00> : vector<1x128xf32>
    %24 = tpu.matmul %18, %6, %cst_14 {dimension_numbers = #tpu.dot_dimension_numbers<[1], [0], [0], [1], [0, 0, 1, 1], [], []>} : vector<1x128xf32>, vector<128x128xf32>, vector<1x128xf32> -> vector<1x128xf32>
    %25 = arith.addf %23, %24 : vector<1x128xf32>
    %26 = math.tanh %25 : vector<1x128xf32>
    %27 = tpu.concatenate %26, %22 in 1 : vector<1x128xf32>, vector<1x128xf32> -> vector<1x256xf32>
    %cst_15 = arith.constant dense<0.000000e+00> : vector<1x128xf32>
    %28 = tpu.matmul %27, %7, %cst_15 {dimension_numbers = #tpu.dot_dimension_numbers<[1], [0], [0], [1], [0, 0, 1, 1], [], []>} : vector<1x256xf32>, vector<256x128xf32>, vector<1x128xf32> -> vector<1x128xf32>
    %29 = arith.addf %28, %8 : vector<1x128xf32>
    %30 = math.tanh %29 : vector<1x128xf32>
    %31 = vector.extract_strided_slice %5 {offsets = [3, 0], sizes = [1, 128], strides = [1, 1]} : vector<8x128xf32> to vector<1x128xf32>
    %cst_16 = arith.constant dense<0.000000e+00> : vector<1x128xf32>
    %32 = tpu.matmul %26, %6, %cst_16 {dimension_numbers = #tpu.dot_dimension_numbers<[1], [0], [0], [1], [0, 0, 1, 1], [], []>} : vector<1x128xf32>, vector<128x128xf32>, vector<1x128xf32> -> vector<1x128xf32>
    %33 = arith.addf %31, %32 : vector<1x128xf32>
    %34 = math.tanh %33 : vector<1x128xf32>
    %35 = tpu.concatenate %34, %30 in 1 : vector<1x128xf32>, vector<1x128xf32> -> vector<1x256xf32>
    %cst_17 = arith.constant dense<0.000000e+00> : vector<1x128xf32>
    %36 = tpu.matmul %35, %7, %cst_17 {dimension_numbers = #tpu.dot_dimension_numbers<[1], [0], [0], [1], [0, 0, 1, 1], [], []>} : vector<1x256xf32>, vector<256x128xf32>, vector<1x128xf32> -> vector<1x128xf32>
    %37 = arith.addf %36, %8 : vector<1x128xf32>
    %38 = math.tanh %37 : vector<1x128xf32>
    %39 = vector.extract_strided_slice %5 {offsets = [4, 0], sizes = [1, 128], strides = [1, 1]} : vector<8x128xf32> to vector<1x128xf32>
    %cst_18 = arith.constant dense<0.000000e+00> : vector<1x128xf32>
    %40 = tpu.matmul %34, %6, %cst_18 {dimension_numbers = #tpu.dot_dimension_numbers<[1], [0], [0], [1], [0, 0, 1, 1], [], []>} : vector<1x128xf32>, vector<128x128xf32>, vector<1x128xf32> -> vector<1x128xf32>
    %41 = arith.addf %39, %40 : vector<1x128xf32>
    %42 = math.tanh %41 : vector<1x128xf32>
    %43 = tpu.concatenate %42, %38 in 1 : vector<1x128xf32>, vector<1x128xf32> -> vector<1x256xf32>
    %cst_19 = arith.constant dense<0.000000e+00> : vector<1x128xf32>
    %44 = tpu.matmul %43, %7, %cst_19 {dimension_numbers = #tpu.dot_dimension_numbers<[1], [0], [0], [1], [0, 0, 1, 1], [], []>} : vector<1x256xf32>, vector<256x128xf32>, vector<1x128xf32> -> vector<1x128xf32>
    %45 = arith.addf %44, %8 : vector<1x128xf32>
    %46 = math.tanh %45 : vector<1x128xf32>
    %47 = vector.extract_strided_slice %5 {offsets = [5, 0], sizes = [1, 128], strides = [1, 1]} : vector<8x128xf32> to vector<1x128xf32>
    %cst_20 = arith.constant dense<0.000000e+00> : vector<1x128xf32>
    %48 = tpu.matmul %42, %6, %cst_20 {dimension_numbers = #tpu.dot_dimension_numbers<[1], [0], [0], [1], [0, 0, 1, 1], [], []>} : vector<1x128xf32>, vector<128x128xf32>, vector<1x128xf32> -> vector<1x128xf32>
    %49 = arith.addf %47, %48 : vector<1x128xf32>
    %50 = math.tanh %49 : vector<1x128xf32>
    %51 = tpu.concatenate %50, %46 in 1 : vector<1x128xf32>, vector<1x128xf32> -> vector<1x256xf32>
    %cst_21 = arith.constant dense<0.000000e+00> : vector<1x128xf32>
    %52 = tpu.matmul %51, %7, %cst_21 {dimension_numbers = #tpu.dot_dimension_numbers<[1], [0], [0], [1], [0, 0, 1, 1], [], []>} : vector<1x256xf32>, vector<256x128xf32>, vector<1x128xf32> -> vector<1x128xf32>
    %53 = arith.addf %52, %8 : vector<1x128xf32>
    %54 = math.tanh %53 : vector<1x128xf32>
    %55 = vector.extract_strided_slice %5 {offsets = [6, 0], sizes = [1, 128], strides = [1, 1]} : vector<8x128xf32> to vector<1x128xf32>
    %cst_22 = arith.constant dense<0.000000e+00> : vector<1x128xf32>
    %56 = tpu.matmul %50, %6, %cst_22 {dimension_numbers = #tpu.dot_dimension_numbers<[1], [0], [0], [1], [0, 0, 1, 1], [], []>} : vector<1x128xf32>, vector<128x128xf32>, vector<1x128xf32> -> vector<1x128xf32>
    %57 = arith.addf %55, %56 : vector<1x128xf32>
    %58 = math.tanh %57 : vector<1x128xf32>
    %59 = tpu.concatenate %58, %54 in 1 : vector<1x128xf32>, vector<1x128xf32> -> vector<1x256xf32>
    %cst_23 = arith.constant dense<0.000000e+00> : vector<1x128xf32>
    %60 = tpu.matmul %59, %7, %cst_23 {dimension_numbers = #tpu.dot_dimension_numbers<[1], [0], [0], [1], [0, 0, 1, 1], [], []>} : vector<1x256xf32>, vector<256x128xf32>, vector<1x128xf32> -> vector<1x128xf32>
    %61 = arith.addf %60, %8 : vector<1x128xf32>
    %62 = math.tanh %61 : vector<1x128xf32>
    %63 = vector.extract_strided_slice %5 {offsets = [7, 0], sizes = [1, 128], strides = [1, 1]} : vector<8x128xf32> to vector<1x128xf32>
    %cst_24 = arith.constant dense<0.000000e+00> : vector<1x128xf32>
    %64 = tpu.matmul %58, %6, %cst_24 {dimension_numbers = #tpu.dot_dimension_numbers<[1], [0], [0], [1], [0, 0, 1, 1], [], []>} : vector<1x128xf32>, vector<128x128xf32>, vector<1x128xf32> -> vector<1x128xf32>
    %65 = arith.addf %63, %64 : vector<1x128xf32>
    %66 = math.tanh %65 : vector<1x128xf32>
    %67 = tpu.concatenate %66, %62 in 1 : vector<1x128xf32>, vector<1x128xf32> -> vector<1x256xf32>
    %cst_25 = arith.constant dense<0.000000e+00> : vector<1x128xf32>
    %68 = tpu.matmul %67, %7, %cst_25 {dimension_numbers = #tpu.dot_dimension_numbers<[1], [0], [0], [1], [0, 0, 1, 1], [], []>} : vector<1x256xf32>, vector<256x128xf32>, vector<1x128xf32> -> vector<1x128xf32>
    %69 = arith.addf %68, %8 : vector<1x128xf32>
    %70 = math.tanh %69 : vector<1x128xf32>
    %c0_26 = arith.constant 0 : index
    %c0_27 = arith.constant 0 : index
    %71 = vector.load %arg6[%c0_26, %c0_27] : memref<128x128xf32, #tpu.memory_space<vmem>>, vector<128x128xf32>
    %cst_28 = arith.constant dense<0.000000e+00> : vector<1x128xf32>
    %72 = tpu.matmul %70, %71, %cst_28 {dimension_numbers = #tpu.dot_dimension_numbers<[1], [0], [0], [1], [0, 0, 1, 1], [], []>} : vector<1x128xf32>, vector<128x128xf32>, vector<1x128xf32> -> vector<1x128xf32>
    %c0_29 = arith.constant 0 : index
    %c0_30 = arith.constant 0 : index
    %73 = vector.load %arg7[%c0_29, %c0_30] : memref<1x128xf32, #tpu.memory_space<vmem>>, vector<1x128xf32>
    %74 = arith.addf %72, %73 : vector<1x128xf32>
    %75 = tpu.concatenate %70, %74 in 1 : vector<1x128xf32>, vector<1x128xf32> -> vector<1x256xf32>
    %c0_31 = arith.constant 0 : index
    %c0_32 = arith.constant 0 : index
    %76 = vector.load %arg8[%c0_31, %c0_32] : memref<1x256xf32, #tpu.memory_space<vmem>>, vector<1x256xf32>
    tpu.vector_store %arg8[%c0_31, %c0_32], %75 {strides = array<i32>} : memref<1x256xf32, #tpu.memory_space<vmem>>, vector<1x256xf32>,
    return
  }
}

</mosaic_0001>

<llo_original>
// kernel: tpu_custom_call.1
$region0: #{tpu_custom_call.1}
  #allocation0 [shape = 'u32[]', space=smem, size = 0x4, offset = 0x4, fixed_abs, tag = 'smem constant byte address 0x4 - core index']
  #allocation1 [shape = 'u32[72,128]{1,0:T(1,128)}', space=vmem, size = 0x9000, scoped, tag = 'internal scratch']
  %s0 = inlined_call_operand.hbm [shape: f32[8,640], index: 0, kind: input, shape index: {}]
  %s1 = inlined_call_operand.hbm [shape: f32[640,128], index: 1, kind: input, shape index: {}]
  %s2 = inlined_call_operand.hbm [shape: f32[128,128], index: 2, kind: input, shape index: {}]
  %s3 = inlined_call_operand.vmem [shape: f32[1,128], index: 3, kind: input, shape index: {}]
  %s4 = inlined_call_operand.hbm [shape: f32[256,128], index: 4, kind: input, shape index: {}]
  %s5 = inlined_call_operand.vmem [shape: f32[1,128], index: 5, kind: input, shape index: {}]
  %s6 = inlined_call_operand.hbm [shape: f32[128,128], index: 6, kind: input, shape index: {}]
  %s7 = inlined_call_operand.vmem [shape: f32[1,128], index: 7, kind: input, shape index: {}]
  %s8 = inlined_call_operand.hbm [shape: f32[1,256], index: 8, kind: output, shape index: {}]
  %s9 = sld [smem:[#allocation0]]
  $region62: #{tpu_custom_call.1} parent=0
    _
  %s11 = ssub.s32 1, %s9
  %s12 = scalar_select 0, %s11, %s9
  $region1: #{tpu_custom_call.1} parent=0
    #allocation2 [shape = 'u8[20480]{0}', space=vmem, size = 0x5000, scoped, tag = 'input window, operand 0, single buffered']
    #allocation3 [shape = 's32[1]{0}', space=sflag, size = 0x4, scoped, tag = 'scoped memory for tpu_custom_call.1']
    #allocation4 [shape = 's32[1]{0}', space=sflag, size = 0x4, scoped, tag = 'scoped memory for tpu_custom_call.1']
    #allocation5 [shape = 'u8[327680]{0}', space=vmem, size = 0x50000, scoped, tag = 'input window, operand 1, single buffered']
    #allocation6 [shape = 's32[1]{0}', space=sflag, size = 0x4, scoped, tag = 'scoped memory for tpu_custom_call.1']
    #allocation7 [shape = 'u8[65536]{0}', space=vmem, size = 0x10000, scoped, tag = 'input window, operand 2, single buffered']
    #allocation8 [shape = 'u8[131072]{0}', space=vmem, size = 0x20000, scoped, tag = 'input window, operand 4, single buffered']
    #allocation9 [shape = 's32[1]{0}', space=sflag, size = 0x4, scoped, tag = 'scoped memory for tpu_custom_call.1']
    #allocation10 [shape = 'u8[65536]{0}', space=vmem, size = 0x10000, scoped, tag = 'input window, operand 6, single buffered']
    #allocation11 [shape = 'u8[1024]{0}', space=vmem, size = 0x400, scoped, tag = 'output window, operand 0, single buffered']
    %13 = vsyncpa [#allocation3], 0
    %14 = vsyncpa [#allocation6], 0
    %15 = vsyncpa [#allocation9], 0
    %16 = vsyncpa [#allocation4], 0
    // Predicated region
    $region2: #{tpu_custom_call.1} parent=1 // pred_check
      _
    $region3: #{tpu_custom_call.1} parent=1 // pred_check_branch
      %18 = sbr.rel (0) target = $region5
    $region4: #{tpu_custom_call.1} parent=1 // pred_region
      %20 = vsyncadd [#allocation3], 0
      %s22 = sshll.u32 %s0, 4
      %s23 = int_to_ptr.hbm [resolvable:$true] %s22
      %s24 = sshll.u32 [#allocation2], 4
      %s25 = int_to_ptr.vmem [resolvable:$true] %s24
      %27 = dma.hbm_to_vmem [thread:$0]  %s23, 640, %s25, [#allocation3]
    $region5: #{tpu_custom_call.1} parent=1 // pred_fallthru
      _
    // Predicated region
    $region6: #{tpu_custom_call.1} parent=1 // pred_check
      _
    $region7: #{tpu_custom_call.1} parent=1 // pred_check_branch
      %29 = sbr.rel (0) target = $region9
    $region8: #{tpu_custom_call.1} parent=1 // pred_region
      %31 = vsyncadd [#allocation6], 0
      %s32 = sshll.u32 %s1, 4
      %s33 = int_to_ptr.hbm [resolvable:$true] %s32
      %s34 = sshll.u32 [#allocation5], 4
      %s35 = int_to_ptr.vmem [resolvable:$true] %s34
      %40 = dma.hbm_to_vmem [thread:$0]  %s33, 10240, %s35, [#allocation6], 128, 128, 8
    $region9: #{tpu_custom_call.1} parent=1 // pred_fallthru
      _
    // Predicated region
    $region10: #{tpu_custom_call.1} parent=1 // pred_check
      _
    $region11: #{tpu_custom_call.1} parent=1 // pred_check_branch
      %42 = sbr.rel (0) target = $region13
    $region12: #{tpu_custom_call.1} parent=1 // pred_region
      %44 = vsyncadd [#allocation6], 0
      %s45 = sshll.u32 %s2, 4
      %s46 = int_to_ptr.hbm [resolvable:$true] %s45
      %s47 = sshll.u32 [#allocation7], 4
      %s48 = int_to_ptr.vmem [resolvable:$true] %s47
      %53 = dma.hbm_to_vmem [thread:$0]  %s46, 2048, %s48, [#allocation6], 128, 128, 8
    $region13: #{tpu_custom_call.1} parent=1 // pred_fallthru
      _
    // Predicated region
    $region14: #{tpu_custom_call.1} parent=1 // pred_check
      _
    $region15: #{tpu_custom_call.1} parent=1 // pred_check_branch
      %55 = sbr.rel (0) target = $region17
    $region16: #{tpu_custom_call.1} parent=1 // pred_region
      _
    $region17: #{tpu_custom_call.1} parent=1 // pred_fallthru
      _
    // Predicated region
    $region18: #{tpu_custom_call.1} parent=1 // pred_check
      _
    $region19: #{tpu_custom_call.1} parent=1 // pred_check_branch
      %57 = sbr.rel (0) target = $region21
    $region20: #{tpu_custom_call.1} parent=1 // pred_region
      %59 = vsyncadd [#allocation9], 0
      %s60 = sshll.u32 %s4, 4
      %s61 = int_to_ptr.hbm [resolvable:$true] %s60
      %s62 = sshll.u32 [#allocation8], 4
      %s63 = int_to_ptr.vmem [resolvable:$true] %s62
      %68 = dma.hbm_to_vmem [thread:$0]  %s61, 4096, %s63, [#allocation9], 128, 128, 8
    $region21: #{tpu_custom_call.1} parent=1 // pred_fallthru
      _
    // Predicated region
    $region22: #{tpu_custom_call.1} parent=1 // pred_check
      _
    $region23: #{tpu_custom_call.1} parent=1 // pred_check_branch
      %70 = sbr.rel (0) target = $region25
    $region24: #{tpu_custom_call.1} parent=1 // pred_region
      _
    $region25: #{tpu_custom_call.1} parent=1 // pred_fallthru
      _
    // Predicated region
    $region26: #{tpu_custom_call.1} parent=1 // pred_check
      _
    $region27: #{tpu_custom_call.1} parent=1 // pred_check_branch
      %72 = sbr.rel (0) target = $region29
    $region28: #{tpu_custom_call.1} parent=1 // pred_region
      %74 = vsyncadd [#allocation9], 0
      %s75 = sshll.u32 %s6, 4
      %s76 = int_to_ptr.hbm [resolvable:$true] %s75
      %s77 = sshll.u32 [#allocation10], 4
      %s78 = int_to_ptr.vmem [resolvable:$true] %s77
      %83 = dma.hbm_to_vmem [thread:$0]  %s76, 2048, %s78, [#allocation9], 128, 128, 8
    $region29: #{tpu_custom_call.1} parent=1 // pred_fallthru
      _
    // Predicated region
    $region30: #{tpu_custom_call.1} parent=1 // pred_check
      _
    $region31: #{tpu_custom_call.1} parent=1 // pred_check_branch
      %85 = sbr.rel (0) target = $region33
    $region32: #{tpu_custom_call.1} parent=1 // pred_region
      _
    $region33: #{tpu_custom_call.1} parent=1 // pred_fallthru
      _
    // Predicated region
    $region34: #{tpu_custom_call.1} parent=1 // pred_check
      _
    $region35: #{tpu_custom_call.1} parent=1 // pred_check_branch
      %87 = sbr.rel (0) target = $region37
    $region36: #{tpu_custom_call.1} parent=1 // pred_region
      %89 = dma.done [#allocation3], 640
    $region37: #{tpu_custom_call.1} parent=1 // pred_fallthru
      _
    // Predicated region
    $region38: #{tpu_custom_call.1} parent=1 // pred_check
      _
    $region39: #{tpu_custom_call.1} parent=1 // pred_check_branch
      %91 = sbr.rel (0) target = $region41
    $region40: #{tpu_custom_call.1} parent=1 // pred_region
      %93 = dma.done [#allocation6], 10240
    $region41: #{tpu_custom_call.1} parent=1 // pred_fallthru
      _
    // Predicated region
    $region42: #{tpu_custom_call.1} parent=1 // pred_check
      _
    $region43: #{tpu_custom_call.1} parent=1 // pred_check_branch
      %95 = sbr.rel (0) target = $region45
    $region44: #{tpu_custom_call.1} parent=1 // pred_region
      %97 = dma.done [#allocation6], 2048
    $region45: #{tpu_custom_call.1} parent=1 // pred_fallthru
      _
    // Predicated region
    $region46: #{tpu_custom_call.1} parent=1 // pred_check
      _
    $region47: #{tpu_custom_call.1} parent=1 // pred_check_branch
      %99 = sbr.rel (0) target = $region49
    $region48: #{tpu_custom_call.1} parent=1 // pred_region
      %101 = dma.done [#allocation9], 4096
    $region49: #{tpu_custom_call.1} parent=1 // pred_fallthru
      _
    // Predicated region
    $region50: #{tpu_custom_call.1} parent=1 // pred_check
      _
    $region51: #{tpu_custom_call.1} parent=1 // pred_check_branch
      %103 = sbr.rel (0) target = $region53
    $region52: #{tpu_custom_call.1} parent=1 // pred_region
      %105 = dma.done [#allocation9], 2048
    $region53: #{tpu_custom_call.1} parent=1 // pred_fallthru
      _
    %v106 = vld [vmem:[#allocation2] sm:$0xff]
    %v107 = vld [vmem:[#allocation2 + $0x8] sm:$0xff]
    %v108 = vld [vmem:[#allocation2 + $0x10] sm:$0xff]
    %v109 = vld [vmem:[#allocation2 + $0x18] sm:$0xff]
    %v110 = vld [vmem:[#allocation2 + $0x20] sm:$0xff]
    %v111 = vld [vmem:[#allocation5] sm:$0xff]
    %v112 = vld [vmem:[#allocation5 + $0x8] sm:$0xff]
    %v113 = vld [vmem:[#allocation5 + $0x10] sm:$0xff]
    %v114 = vld [vmem:[#allocation5 + $0x18] sm:$0xff]
    %v115 = vld [vmem:[#allocation5 + $0x20] sm:$0xff]
    %v116 = vld [vmem:[#allocation5 + $0x28] sm:$0xff]
    %v117 = vld [vmem:[#allocation5 + $0x30] sm:$0xff]
    %v118 = vld [vmem:[#allocation5 + $0x38] sm:$0xff]
    %v119 = vld [vmem:[#allocation5 + $0x40] sm:$0xff]
    %v120 = vld [vmem:[#allocation5 + $0x48] sm:$0xff]
    %v121 = vld [vmem:[#allocation5 + $0x50] sm:$0xff]
    %v122 = vld [vmem:[#allocation5 + $0x58] sm:$0xff]
    %v123 = vld [vmem:[#allocation5 + $0x60] sm:$0xff]
    %v124 = vld [vmem:[#allocation5 + $0x68] sm:$0xff]
    %v125 = vld [vmem:[#allocation5 + $0x70] sm:$0xff]
    %v126 = vld [vmem:[#allocation5 + $0x78] sm:$0xff]
    %v127 = vld [vmem:[#allocation5 + $0x80] sm:$0xff]
    %v128 = vld [vmem:[#allocation5 + $0x88] sm:$0xff]
    %v129 = vld [vmem:[#allocation5 + $0x90] sm:$0xff]
    %v130 = vld [vmem:[#allocation5 + $0x98] sm:$0xff]
    %v131 = vld [vmem:[#allocation5 + $0xa0] sm:$0xff]
    %v132 = vld [vmem:[#allocation5 + $0xa8] sm:$0xff]
    %v133 = vld [vmem:[#allocation5 + $0xb0] sm:$0xff]
    %v134 = vld [vmem:[#allocation5 + $0xb8] sm:$0xff]
    %v135 = vld [vmem:[#allocation5 + $0xc0] sm:$0xff]
    %v136 = vld [vmem:[#allocation5 + $0xc8] sm:$0xff]
    %v137 = vld [vmem:[#allocation5 + $0xd0] sm:$0xff]
    %v138 = vld [vmem:[#allocation5 + $0xd8] sm:$0xff]
    %v139 = vld [vmem:[#allocation5 + $0xe0] sm:$0xff]
    %v140 = vld [vmem:[#allocation5 + $0xe8] sm:$0xff]
    %v141 = vld [vmem:[#allocation5 + $0xf0] sm:$0xff]
    %v142 = vld [vmem:[#allocation5 + $0xf8] sm:$0xff]
    %v143 = vld [vmem:[#allocation5 + $0x100] sm:$0xff]
    %v144 = vld [vmem:[#allocation5 + $0x108] sm:$0xff]
    %v145 = vld [vmem:[#allocation5 + $0x110] sm:$0xff]
    %v146 = vld [vmem:[#allocation5 + $0x118] sm:$0xff]
    %v147 = vld [vmem:[#allocation5 + $0x120] sm:$0xff]
    %v148 = vld [vmem:[#allocation5 + $0x128] sm:$0xff]
    %v149 = vld [vmem:[#allocation5 + $0x130] sm:$0xff]
    %v150 = vld [vmem:[#allocation5 + $0x138] sm:$0xff]
    %v151 = vld [vmem:[#allocation5 + $0x140] sm:$0xff]
    %v152 = vld [vmem:[#allocation5 + $0x148] sm:$0xff]
    %v153 = vld [vmem:[#allocation5 + $0x150] sm:$0xff]
    %v154 = vld [vmem:[#allocation5 + $0x158] sm:$0xff]
    %v155 = vld [vmem:[#allocation5 + $0x160] sm:$0xff]
    %v156 = vld [vmem:[#allocation5 + $0x168] sm:$0xff]
    %v157 = vld [vmem:[#allocation5 + $0x170] sm:$0xff]
    %v158 = vld [vmem:[#allocation5 + $0x178] sm:$0xff]
    %v159 = vld [vmem:[#allocation5 + $0x180] sm:$0xff]
    %v160 = vld [vmem:[#allocation5 + $0x188] sm:$0xff]
    %v161 = vld [vmem:[#allocation5 + $0x190] sm:$0xff]
    %v162 = vld [vmem:[#allocation5 + $0x198] sm:$0xff]
    %v163 = vld [vmem:[#allocation5 + $0x1a0] sm:$0xff]
    %v164 = vld [vmem:[#allocation5 + $0x1a8] sm:$0xff]
    %v165 = vld [vmem:[#allocation5 + $0x1b0] sm:$0xff]
    %v166 = vld [vmem:[#allocation5 + $0x1b8] sm:$0xff]
    %v167 = vld [vmem:[#allocation5 + $0x1c0] sm:$0xff]
    %v168 = vld [vmem:[#allocation5 + $0x1c8] sm:$0xff]
    %v169 = vld [vmem:[#allocation5 + $0x1d0] sm:$0xff]
    %v170 = vld [vmem:[#allocation5 + $0x1d8] sm:$0xff]
    %v171 = vld [vmem:[#allocation5 + $0x1e0] sm:$0xff]
    %v172 = vld [vmem:[#allocation5 + $0x1e8] sm:$0xff]
    %v173 = vld [vmem:[#allocation5 + $0x1f0] sm:$0xff]
    %v174 = vld [vmem:[#allocation5 + $0x1f8] sm:$0xff]
    %v175 = vld [vmem:[#allocation5 + $0x200] sm:$0xff]
    %v176 = vld [vmem:[#allocation5 + $0x208] sm:$0xff]
    %v177 = vld [vmem:[#allocation5 + $0x210] sm:$0xff]
    %v178 = vld [vmem:[#allocation5 + $0x218] sm:$0xff]
    %v179 = vld [vmem:[#allocation5 + $0x220] sm:$0xff]
    %v180 = vld [vmem:[#allocation5 + $0x228] sm:$0xff]
    %v181 = vld [vmem:[#allocation5 + $0x230] sm:$0xff]
    %v182 = vld [vmem:[#allocation5 + $0x238] sm:$0xff]
    %v183 = vld [vmem:[#allocation5 + $0x240] sm:$0xff]
    %v184 = vld [vmem:[#allocation5 + $0x248] sm:$0xff]
    %v185 = vld [vmem:[#allocation5 + $0x250] sm:$0xff]
    %v186 = vld [vmem:[#allocation5 + $0x258] sm:$0xff]
    %v187 = vld [vmem:[#allocation5 + $0x260] sm:$0xff]
    %v188 = vld [vmem:[#allocation5 + $0x268] sm:$0xff]
    %v189 = vld [vmem:[#allocation5 + $0x270] sm:$0xff]
    %v190 = vld [vmem:[#allocation5 + $0x278] sm:$0xff]
    %v191 = vld [vmem:[%s3] sm:$0x1]
    %v193 = vperm.slane %v191, 0
    %195 = vmatpush.msra.mxu0 %v126
    %196 = vmatpush.msra.mxu0 %v125
    %197 = vmatpush.msra.mxu0 %v124
    %198 = vmatpush.msra.mxu0 %v123
    %199 = vmatpush.msra.mxu0 %v122
    %200 = vmatpush.msra.mxu0 %v121
    %201 = vmatpush.msra.mxu0 %v120
    %202 = vmatpush.msra.mxu0 %v119
    %203 = vmatpush.msra.mxu0 %v118
    %204 = vmatpush.msra.mxu0 %v117
    %205 = vmatpush.msra.mxu0 %v116
    %206 = vmatpush.msra.mxu0 %v115
    %207 = vmatpush.msra.mxu0 %v114
    %208 = vmatpush.msra.mxu0 %v113
    %209 = vmatpush.msra.mxu0 %v112
    %210 = vmatpush.msra.mxu0 %v111
    %211 = vmatmul.f32.gmra.mxu0 %v106
    %v212 = vpop.f32.mrf.mxu0
    %v213 = vadd.f32 %v193, %v212
    %214 = vdwg.mxu0
    %215 = vmatpush.msra.mxu0 %v142
    %216 = vmatpush.msra.mxu0 %v141
    %217 = vmatpush.msra.mxu0 %v140
    %218 = vmatpush.msra.mxu0 %v139
    %219 = vmatpush.msra.mxu0 %v138
    %220 = vmatpush.msra.mxu0 %v137
    %221 = vmatpush.msra.mxu0 %v136
    %222 = vmatpush.msra.mxu0 %v135
    %223 = vmatpush.msra.mxu0 %v134
    %224 = vmatpush.msra.mxu0 %v133
    %225 = vmatpush.msra.mxu0 %v132
    %226 = vmatpush.msra.mxu0 %v131
    %227 = vmatpush.msra.mxu0 %v130
    %228 = vmatpush.msra.mxu0 %v129
    %229 = vmatpush.msra.mxu0 %v128
    %230 = vmatpush.msra.mxu0 %v127
    %231 = vmatmul.f32.gmra.mxu0 %v107
    %v232 = vpop.f32.mrf.mxu0
    %v233 = vadd.f32 %v213, %v232
    %234 = vdwg.mxu0
    %235 = vmatpush.msra.mxu0 %v158
    %236 = vmatpush.msra.mxu0 %v157
    %237 = vmatpush.msra.mxu0 %v156
    %238 = vmatpush.msra.mxu0 %v155
    %239 = vmatpush.msra.mxu0 %v154
    %240 = vmatpush.msra.mxu0 %v153
    %241 = vmatpush.msra.mxu0 %v152
    %242 = vmatpush.msra.mxu0 %v151
    %243 = vmatpush.msra.mxu0 %v150
    %244 = vmatpush.msra.mxu0 %v149
    %245 = vmatpush.msra.mxu0 %v148
    %246 = vmatpush.msra.mxu0 %v147
    %247 = vmatpush.msra.mxu0 %v146
    %248 = vmatpush.msra.mxu0 %v145
    %249 = vmatpush.msra.mxu0 %v144
    %250 = vmatpush.msra.mxu0 %v143
    %251 = vmatmul.f32.gmra.mxu0 %v108
    %v252 = vpop.f32.mrf.mxu0
    %v253 = vadd.f32 %v233, %v252
    %254 = vdwg.mxu0
    %255 = vmatpush.msra.mxu0 %v174
    %256 = vmatpush.msra.mxu0 %v173
    %257 = vmatpush.msra.mxu0 %v172
    %258 = vmatpush.msra.mxu0 %v171
    %259 = vmatpush.msra.mxu0 %v170
    %260 = vmatpush.msra.mxu0 %v169
    %261 = vmatpush.msra.mxu0 %v168
    %262 = vmatpush.msra.mxu0 %v167
    %263 = vmatpush.msra.mxu0 %v166
    %264 = vmatpush.msra.mxu0 %v165
    %265 = vmatpush.msra.mxu0 %v164
    %266 = vmatpush.msra.mxu0 %v163
    %267 = vmatpush.msra.mxu0 %v162
    %268 = vmatpush.msra.mxu0 %v161
    %269 = vmatpush.msra.mxu0 %v160
    %270 = vmatpush.msra.mxu0 %v159
    %271 = vmatmul.f32.gmra.mxu0 %v109
    %v272 = vpop.f32.mrf.mxu0
    %v273 = vadd.f32 %v253, %v272
    %274 = vdwg.mxu0
    %275 = vmatpush.msra.mxu0 %v190
    %276 = vmatpush.msra.mxu0 %v189
    %277 = vmatpush.msra.mxu0 %v188
    %278 = vmatpush.msra.mxu0 %v187
    %279 = vmatpush.msra.mxu0 %v186
    %280 = vmatpush.msra.mxu0 %v185
    %281 = vmatpush.msra.mxu0 %v184
    %282 = vmatpush.msra.mxu0 %v183
    %283 = vmatpush.msra.mxu0 %v182
    %284 = vmatpush.msra.mxu0 %v181
    %285 = vmatpush.msra.mxu0 %v180
    %286 = vmatpush.msra.mxu0 %v179
    %287 = vmatpush.msra.mxu0 %v178
    %288 = vmatpush.msra.mxu0 %v177
    %289 = vmatpush.msra.mxu0 %v176
    %290 = vmatpush.msra.mxu0 %v175
    %291 = vmatmul.f32.gmra.mxu0 %v110
    %v292 = vpop.f32.mrf.mxu0
    %v293 = vadd.f32 %v273, %v292
    %294 = vdwg.mxu0
    %v295 = vld [vmem:[#allocation7] sm:$0xff]
    %v296 = vld [vmem:[#allocation7 + $0x8] sm:$0xff]
    %v297 = vld [vmem:[#allocation7 + $0x10] sm:$0xff]
    %v298 = vld [vmem:[#allocation7 + $0x18] sm:$0xff]
    %v299 = vld [vmem:[#allocation7 + $0x20] sm:$0xff]
    %v300 = vld [vmem:[#allocation7 + $0x28] sm:$0xff]
    %v301 = vld [vmem:[#allocation7 + $0x30] sm:$0xff]
    %v302 = vld [vmem:[#allocation7 + $0x38] sm:$0xff]
    %v303 = vld [vmem:[#allocation7 + $0x40] sm:$0xff]
    %v304 = vld [vmem:[#allocation7 + $0x48] sm:$0xff]
    %v305 = vld [vmem:[#allocation7 + $0x50] sm:$0xff]
    %v306 = vld [vmem:[#allocation7 + $0x58] sm:$0xff]
    %v307 = vld [vmem:[#allocation7 + $0x60] sm:$0xff]
    %v308 = vld [vmem:[#allocation7 + $0x68] sm:$0xff]
    %v309 = vld [vmem:[#allocation7 + $0x70] sm:$0xff]
    %v310 = vld [vmem:[#allocation7 + $0x78] sm:$0xff]
    %v311 = vld [vmem:[#allocation8] sm:$0xff]
    %v312 = vld [vmem:[#allocation8 + $0x8] sm:$0xff]
    %v313 = vld [vmem:[#allocation8 + $0x10] sm:$0xff]
    %v314 = vld [vmem:[#allocation8 + $0x18] sm:$0xff]
    %v315 = vld [vmem:[#allocation8 + $0x20] sm:$0xff]
    %v316 = vld [vmem:[#allocation8 + $0x28] sm:$0xff]
    %v317 = vld [vmem:[#allocation8 + $0x30] sm:$0xff]
    %v318 = vld [vmem:[#allocation8 + $0x38] sm:$0xff]
    %v319 = vld [vmem:[#allocation8 + $0x40] sm:$0xff]
    %v320 = vld [vmem:[#allocation8 + $0x48] sm:$0xff]
    %v321 = vld [vmem:[#allocation8 + $0x50] sm:$0xff]
    %v322 = vld [vmem:[#allocation8 + $0x58] sm:$0xff]
    %v323 = vld [vmem:[#allocation8 + $0x60] sm:$0xff]
    %v324 = vld [vmem:[#allocation8 + $0x68] sm:$0xff]
    %v325 = vld [vmem:[#allocation8 + $0x70] sm:$0xff]
    %v326 = vld [vmem:[#allocation8 + $0x78] sm:$0xff]
    %v327 = vld [vmem:[#allocation8 + $0x80] sm:$0xff]
    %v328 = vld [vmem:[#allocation8 + $0x88] sm:$0xff]
    %v329 = vld [vmem:[#allocation8 + $0x90] sm:$0xff]
    %v330 = vld [vmem:[#allocation8 + $0x98] sm:$0xff]
    %v331 = vld [vmem:[#allocation8 + $0xa0] sm:$0xff]
    %v332 = vld [vmem:[#allocation8 + $0xa8] sm:$0xff]
    %v333 = vld [vmem:[#allocation8 + $0xb0] sm:$0xff]
    %v334 = vld [vmem:[#allocation8 + $0xb8] sm:$0xff]
    %v335 = vld [vmem:[#allocation8 + $0xc0] sm:$0xff]
    %v336 = vld [vmem:[#allocation8 + $0xc8] sm:$0xff]
    %v337 = vld [vmem:[#allocation8 + $0xd0] sm:$0xff]
    %v338 = vld [vmem:[#allocation8 + $0xd8] sm:$0xff]
    %v339 = vld [vmem:[#allocation8 + $0xe0] sm:$0xff]
    %v340 = vld [vmem:[#allocation8 + $0xe8] sm:$0xff]
    %v341 = vld [vmem:[#allocation8 + $0xf0] sm:$0xff]
    %v342 = vld [vmem:[#allocation8 + $0xf8] sm:$0xff]
    %v343 = vld [vmem:[%s5] sm:$0x1]
    %v344 = vtanh.pop %v293
    %345 = vmatpush.msra.mxu0 %v326
    %346 = vmatpush.msra.mxu0 %v325
    %347 = vmatpush.msra.mxu0 %v324
    %348 = vmatpush.msra.mxu0 %v323
    %349 = vmatpush.msra.mxu0 %v322
    %350 = vmatpush.msra.mxu0 %v321
    %351 = vmatpush.msra.mxu0 %v320
    %352 = vmatpush.msra.mxu0 %v319
    %353 = vmatpush.msra.mxu0 %v318
    %354 = vmatpush.msra.mxu0 %v317
    %355 = vmatpush.msra.mxu0 %v316
    %356 = vmatpush.msra.mxu0 %v315
    %357 = vmatpush.msra.mxu0 %v314
    %358 = vmatpush.msra.mxu0 %v313
    %359 = vmatpush.msra.mxu0 %v312
    %360 = vmatpush.msra.mxu0 %v311
    %361 = vmatmul.f32.gmra.mxu0 %v344
    %v362 = vpop.f32.mrf.mxu0
    %v363 = vadd.f32 %v343, %v362
    %364 = vdwg.mxu0
    %v365 = vtanh.pop %v363
    %366 = vmatpush.msra.mxu0 %v310
    %367 = vmatpush.msra.mxu0 %v309
    %368 = vmatpush.msra.mxu0 %v308
    %369 = vmatpush.msra.mxu0 %v307
    %370 = vmatpush.msra.mxu0 %v306
    %371 = vmatpush.msra.mxu0 %v305
    %372 = vmatpush.msra.mxu0 %v304
    %373 = vmatpush.msra.mxu0 %v303
    %374 = vmatpush.msra.mxu0 %v302
    %375 = vmatpush.msra.mxu0 %v301
    %376 = vmatpush.msra.mxu0 %v300
    %377 = vmatpush.msra.mxu0 %v299
    %378 = vmatpush.msra.mxu0 %v298
    %379 = vmatpush.msra.mxu0 %v297
    %380 = vmatpush.msra.mxu0 %v296
    %381 = vmatpush.msra.mxu0 %v295
    %382 = vmatmul.f32.gmra.mxu0 %v344
    %v383 = vpop.f32.mrf.mxu0
    %v384 = vadd.f32 0.0, %v383
    %385 = vdwg.mxu0
    %v387 = vrot.slane %v384, 7
    %v389 = vadd.f32 %v293, %v387
    %v390 = vtanh.pop %v389
    %v392 = vrot.slane %v365, 7
    %v394 = vrot.slane %v390, 1
    %v395 = vrot.slane %v392, 1
    %398 = vmatpush.msra.mxu0 %v326
    %399 = vmatpush.msra.mxu0 %v325
    %400 = vmatpush.msra.mxu0 %v324
    %401 = vmatpush.msra.mxu0 %v323
    %402 = vmatpush.msra.mxu0 %v322
    %403 = vmatpush.msra.mxu0 %v321
    %404 = vmatpush.msra.mxu0 %v320
    %405 = vmatpush.msra.mxu0 %v319
    %406 = vmatpush.msra.mxu0 %v318
    %407 = vmatpush.msra.mxu0 %v317
    %408 = vmatpush.msra.mxu0 %v316
    %409 = vmatpush.msra.mxu0 %v315
    %410 = vmatpush.msra.mxu0 %v314
    %411 = vmatpush.msra.mxu0 %v313
    %412 = vmatpush.msra.mxu0 %v312
    %413 = vmatpush.msra.mxu0 %v311
    %414 = vmatmul.f32.gmra.mxu0 %v394
    %v415 = vpop.f32.mrf.mxu0
    %v416 = vadd.f32 %v343, %v415
    %417 = vdwg.mxu0
    %418 = vmatpush.msra.mxu0 %v342
    %419 = vmatpush.msra.mxu0 %v341
    %420 = vmatpush.msra.mxu0 %v340
    %421 = vmatpush.msra.mxu0 %v339
    %422 = vmatpush.msra.mxu0 %v338
    %423 = vmatpush.msra.mxu0 %v337
    %424 = vmatpush.msra.mxu0 %v336
    %425 = vmatpush.msra.mxu0 %v335
    %426 = vmatpush.msra.mxu0 %v334
    %427 = vmatpush.msra.mxu0 %v333
    %428 = vmatpush.msra.mxu0 %v332
    %429 = vmatpush.msra.mxu0 %v331
    %430 = vmatpush.msra.mxu0 %v330
    %431 = vmatpush.msra.mxu0 %v329
    %432 = vmatpush.msra.mxu0 %v328
    %433 = vmatpush.msra.mxu0 %v327
    %434 = vmatmul.f32.gmra.mxu0 %v395
    %v435 = vpop.f32.mrf.mxu0
    %v436 = vadd.f32 %v416, %v435
    %437 = vdwg.mxu0
    %v438 = vtanh.pop %v436
    %439 = vmatpush.msra.mxu0 %v310
    %440 = vmatpush.msra.mxu0 %v309
    %441 = vmatpush.msra.mxu0 %v308
    %442 = vmatpush.msra.mxu0 %v307
    %443 = vmatpush.msra.mxu0 %v306
    %444 = vmatpush.msra.mxu0 %v305
    %445 = vmatpush.msra.mxu0 %v304
    %446 = vmatpush.msra.mxu0 %v303
    %447 = vmatpush.msra.mxu0 %v302
    %448 = vmatpush.msra.mxu0 %v301
    %449 = vmatpush.msra.mxu0 %v300
    %450 = vmatpush.msra.mxu0 %v299
    %451 = vmatpush.msra.mxu0 %v298
    %452 = vmatpush.msra.mxu0 %v297
    %453 = vmatpush.msra.mxu0 %v296
    %454 = vmatpush.msra.mxu0 %v295
    %455 = vmatmul.f32.gmra.mxu0 %v394
    %v456 = vpop.f32.mrf.mxu0
    %v457 = vadd.f32 0.0, %v456
    %458 = vdwg.mxu0
    %v460 = vrot.slane %v457, 6
    %v462 = vadd.f32 %v293, %v460
    %v463 = vtanh.pop %v462
    %v465 = vrot.slane %v438, 6
    %v467 = vrot.slane %v463, 2
    %v468 = vrot.slane %v465, 2
    %471 = vmatpush.msra.mxu0 %v326
    %472 = vmatpush.msra.mxu0 %v325
    %473 = vmatpush.msra.mxu0 %v324
    %474 = vmatpush.msra.mxu0 %v323
    %475 = vmatpush.msra.mxu0 %v322
    %476 = vmatpush.msra.mxu0 %v321
    %477 = vmatpush.msra.mxu0 %v320
    %478 = vmatpush.msra.mxu0 %v319
    %479 = vmatpush.msra.mxu0 %v318
    %480 = vmatpush.msra.mxu0 %v317
    %481 = vmatpush.msra.mxu0 %v316
    %482 = vmatpush.msra.mxu0 %v315
    %483 = vmatpush.msra.mxu0 %v314
    %484 = vmatpush.msra.mxu0 %v313
    %485 = vmatpush.msra.mxu0 %v312
    %486 = vmatpush.msra.mxu0 %v311
    %487 = vmatmul.f32.gmra.mxu0 %v467
    %v488 = vpop.f32.mrf.mxu0
    %v489 = vadd.f32 %v343, %v488
    %490 = vdwg.mxu0
    %491 = vmatpush.msra.mxu0 %v342
    %492 = vmatpush.msra.mxu0 %v341
    %493 = vmatpush.msra.mxu0 %v340
    %494 = vmatpush.msra.mxu0 %v339
    %495 = vmatpush.msra.mxu0 %v338
    %496 = vmatpush.msra.mxu0 %v337
    %497 = vmatpush.msra.mxu0 %v336
    %498 = vmatpush.msra.mxu0 %v335
    %499 = vmatpush.msra.mxu0 %v334
    %500 = vmatpush.msra.mxu0 %v333
    %501 = vmatpush.msra.mxu0 %v332
    %502 = vmatpush.msra.mxu0 %v331
    %503 = vmatpush.msra.mxu0 %v330
    %504 = vmatpush.msra.mxu0 %v329
    %505 = vmatpush.msra.mxu0 %v328
    %506 = vmatpush.msra.mxu0 %v327
    %507 = vmatmul.f32.gmra.mxu0 %v468
    %v508 = vpop.f32.mrf.mxu0
    %v509 = vadd.f32 %v489, %v508
    %510 = vdwg.mxu0
    %v511 = vtanh.pop %v509
    %512 = vmatpush.msra.mxu0 %v310
    %513 = vmatpush.msra.mxu0 %v309
    %514 = vmatpush.msra.mxu0 %v308
    %515 = vmatpush.msra.mxu0 %v307
    %516 = vmatpush.msra.mxu0 %v306
    %517 = vmatpush.msra.mxu0 %v305
    %518 = vmatpush.msra.mxu0 %v304
    %519 = vmatpush.msra.mxu0 %v303
    %520 = vmatpush.msra.mxu0 %v302
    %521 = vmatpush.msra.mxu0 %v301
    %522 = vmatpush.msra.mxu0 %v300
    %523 = vmatpush.msra.mxu0 %v299
    %524 = vmatpush.msra.mxu0 %v298
    %525 = vmatpush.msra.mxu0 %v297
    %526 = vmatpush.msra.mxu0 %v296
    %527 = vmatpush.msra.mxu0 %v295
    %528 = vmatmul.f32.gmra.mxu0 %v467
    %v529 = vpop.f32.mrf.mxu0
    %v530 = vadd.f32 0.0, %v529
    %531 = vdwg.mxu0
    %v533 = vrot.slane %v530, 5
    %v535 = vadd.f32 %v293, %v533
    %v536 = vtanh.pop %v535
    %v538 = vrot.slane %v511, 5
    %v540 = vrot.slane %v536, 3
    %v541 = vrot.slane %v538, 3
    %544 = vmatpush.msra.mxu0 %v326
    %545 = vmatpush.msra.mxu0 %v325
    %546 = vmatpush.msra.mxu0 %v324
    %547 = vmatpush.msra.mxu0 %v323
    %548 = vmatpush.msra.mxu0 %v322
    %549 = vmatpush.msra.mxu0 %v321
    %550 = vmatpush.msra.mxu0 %v320
    %551 = vmatpush.msra.mxu0 %v319
    %552 = vmatpush.msra.mxu0 %v318
    %553 = vmatpush.msra.mxu0 %v317
    %554 = vmatpush.msra.mxu0 %v316
    %555 = vmatpush.msra.mxu0 %v315
    %556 = vmatpush.msra.mxu0 %v314
    %557 = vmatpush.msra.mxu0 %v313
    %558 = vmatpush.msra.mxu0 %v312
    %559 = vmatpush.msra.mxu0 %v311
    %560 = vmatmul.f32.gmra.mxu0 %v540
    %v561 = vpop.f32.mrf.mxu0
    %v562 = vadd.f32 %v343, %v561
    %563 = vdwg.mxu0
    %564 = vmatpush.msra.mxu0 %v342
    %565 = vmatpush.msra.mxu0 %v341
    %566 = vmatpush.msra.mxu0 %v340
    %567 = vmatpush.msra.mxu0 %v339
    %568 = vmatpush.msra.mxu0 %v338
    %569 = vmatpush.msra.mxu0 %v337
    %570 = vmatpush.msra.mxu0 %v336
    %571 = vmatpush.msra.mxu0 %v335
    %572 = vmatpush.msra.mxu0 %v334
    %573 = vmatpush.msra.mxu0 %v333
    %574 = vmatpush.msra.mxu0 %v332
    %575 = vmatpush.msra.mxu0 %v331
    %576 = vmatpush.msra.mxu0 %v330
    %577 = vmatpush.msra.mxu0 %v329
    %578 = vmatpush.msra.mxu0 %v328
    %579 = vmatpush.msra.mxu0 %v327
    %580 = vmatmul.f32.gmra.mxu0 %v541
    %v581 = vpop.f32.mrf.mxu0
    %v582 = vadd.f32 %v562, %v581
    %583 = vdwg.mxu0
    %v584 = vtanh.pop %v582
    %585 = vmatpush.msra.mxu0 %v310
    %586 = vmatpush.msra.mxu0 %v309
    %587 = vmatpush.msra.mxu0 %v308
    %588 = vmatpush.msra.mxu0 %v307
    %589 = vmatpush.msra.mxu0 %v306
    %590 = vmatpush.msra.mxu0 %v305
    %591 = vmatpush.msra.mxu0 %v304
    %592 = vmatpush.msra.mxu0 %v303
    %593 = vmatpush.msra.mxu0 %v302
    %594 = vmatpush.msra.mxu0 %v301
    %595 = vmatpush.msra.mxu0 %v300
    %596 = vmatpush.msra.mxu0 %v299
    %597 = vmatpush.msra.mxu0 %v298
    %598 = vmatpush.msra.mxu0 %v297
    %599 = vmatpush.msra.mxu0 %v296
    %600 = vmatpush.msra.mxu0 %v295
    %601 = vmatmul.f32.gmra.mxu0 %v540
    %v602 = vpop.f32.mrf.mxu0
    %v603 = vadd.f32 0.0, %v602
    %604 = vdwg.mxu0
    %v606 = vrot.slane %v603, 4
    %v608 = vadd.f32 %v293, %v606
    %v609 = vtanh.pop %v608
    %v611 = vrot.slane %v584, 4
    %v613 = vrot.slane %v609, 4
    %v614 = vrot.slane %v611, 4
    %617 = vmatpush.msra.mxu0 %v326
    %618 = vmatpush.msra.mxu0 %v325
    %619 = vmatpush.msra.mxu0 %v324
    %620 = vmatpush.msra.mxu0 %v323
    %621 = vmatpush.msra.mxu0 %v322
    %622 = vmatpush.msra.mxu0 %v321
    %623 = vmatpush.msra.mxu0 %v320
    %624 = vmatpush.msra.mxu0 %v319
    %625 = vmatpush.msra.mxu0 %v318
    %626 = vmatpush.msra.mxu0 %v317
    %627 = vmatpush.msra.mxu0 %v316
    %628 = vmatpush.msra.mxu0 %v315
    %629 = vmatpush.msra.mxu0 %v314
    %630 = vmatpush.msra.mxu0 %v313
    %631 = vmatpush.msra.mxu0 %v312
    %632 = vmatpush.msra.mxu0 %v311
    %633 = vmatmul.f32.gmra.mxu0 %v613
    %v634 = vpop.f32.mrf.mxu0
    %v635 = vadd.f32 %v343, %v634
    %636 = vdwg.mxu0
    %637 = vmatpush.msra.mxu0 %v342
    %638 = vmatpush.msra.mxu0 %v341
    %639 = vmatpush.msra.mxu0 %v340
    %640 = vmatpush.msra.mxu0 %v339
    %641 = vmatpush.msra.mxu0 %v338
    %642 = vmatpush.msra.mxu0 %v337
    %643 = vmatpush.msra.mxu0 %v336
    %644 = vmatpush.msra.mxu0 %v335
    %645 = vmatpush.msra.mxu0 %v334
    %646 = vmatpush.msra.mxu0 %v333
    %647 = vmatpush.msra.mxu0 %v332
    %648 = vmatpush.msra.mxu0 %v331
    %649 = vmatpush.msra.mxu0 %v330
    %650 = vmatpush.msra.mxu0 %v329
    %651 = vmatpush.msra.mxu0 %v328
    %652 = vmatpush.msra.mxu0 %v327
    %653 = vmatmul.f32.gmra.mxu0 %v614
    %v654 = vpop.f32.mrf.mxu0
    %v655 = vadd.f32 %v635, %v654
    %656 = vdwg.mxu0
    %v657 = vtanh.pop %v655
    %658 = vmatpush.msra.mxu0 %v310
    %659 = vmatpush.msra.mxu0 %v309
    %660 = vmatpush.msra.mxu0 %v308
    %661 = vmatpush.msra.mxu0 %v307
    %662 = vmatpush.msra.mxu0 %v306
    %663 = vmatpush.msra.mxu0 %v305
    %664 = vmatpush.msra.mxu0 %v304
    %665 = vmatpush.msra.mxu0 %v303
    %666 = vmatpush.msra.mxu0 %v302
    %667 = vmatpush.msra.mxu0 %v301
    %668 = vmatpush.msra.mxu0 %v300
    %669 = vmatpush.msra.mxu0 %v299
    %670 = vmatpush.msra.mxu0 %v298
    %671 = vmatpush.msra.mxu0 %v297
    %672 = vmatpush.msra.mxu0 %v296
    %673 = vmatpush.msra.mxu0 %v295
    %674 = vmatmul.f32.gmra.mxu0 %v613
    %v675 = vpop.f32.mrf.mxu0
    %v676 = vadd.f32 0.0, %v675
    %677 = vdwg.mxu0
    %v679 = vrot.slane %v676, 3
    %v681 = vadd.f32 %v293, %v679
    %v682 = vtanh.pop %v681
    %v684 = vrot.slane %v657, 3
    %v686 = vrot.slane %v682, 5
    %v687 = vrot.slane %v684, 5
    %690 = vmatpush.msra.mxu0 %v326
    %691 = vmatpush.msra.mxu0 %v325
    %692 = vmatpush.msra.mxu0 %v324
    %693 = vmatpush.msra.mxu0 %v323
    %694 = vmatpush.msra.mxu0 %v322
    %695 = vmatpush.msra.mxu0 %v321
    %696 = vmatpush.msra.mxu0 %v320
    %697 = vmatpush.msra.mxu0 %v319
    %698 = vmatpush.msra.mxu0 %v318
    %699 = vmatpush.msra.mxu0 %v317
    %700 = vmatpush.msra.mxu0 %v316
    %701 = vmatpush.msra.mxu0 %v315
    %702 = vmatpush.msra.mxu0 %v314
    %703 = vmatpush.msra.mxu0 %v313
    %704 = vmatpush.msra.mxu0 %v312
    %705 = vmatpush.msra.mxu0 %v311
    %706 = vmatmul.f32.gmra.mxu0 %v686
    %v707 = vpop.f32.mrf.mxu0
    %v708 = vadd.f32 %v343, %v707
    %709 = vdwg.mxu0
    %710 = vmatpush.msra.mxu0 %v342
    %711 = vmatpush.msra.mxu0 %v341
    %712 = vmatpush.msra.mxu0 %v340
    %713 = vmatpush.msra.mxu0 %v339
    %714 = vmatpush.msra.mxu0 %v338
    %715 = vmatpush.msra.mxu0 %v337
    %716 = vmatpush.msra.mxu0 %v336
    %717 = vmatpush.msra.mxu0 %v335
    %718 = vmatpush.msra.mxu0 %v334
    %719 = vmatpush.msra.mxu0 %v333
    %720 = vmatpush.msra.mxu0 %v332
    %721 = vmatpush.msra.mxu0 %v331
    %722 = vmatpush.msra.mxu0 %v330
    %723 = vmatpush.msra.mxu0 %v329
    %724 = vmatpush.msra.mxu0 %v328
    %725 = vmatpush.msra.mxu0 %v327
    %726 = vmatmul.f32.gmra.mxu0 %v687
    %v727 = vpop.f32.mrf.mxu0
    %v728 = vadd.f32 %v708, %v727
    %729 = vdwg.mxu0
    %v730 = vtanh.pop %v728
    %731 = vmatpush.msra.mxu0 %v310
    %732 = vmatpush.msra.mxu0 %v309
    %733 = vmatpush.msra.mxu0 %v308
    %734 = vmatpush.msra.mxu0 %v307
    %735 = vmatpush.msra.mxu0 %v306
    %736 = vmatpush.msra.mxu0 %v305
    %737 = vmatpush.msra.mxu0 %v304
    %738 = vmatpush.msra.mxu0 %v303
    %739 = vmatpush.msra.mxu0 %v302
    %740 = vmatpush.msra.mxu0 %v301
    %741 = vmatpush.msra.mxu0 %v300
    %742 = vmatpush.msra.mxu0 %v299
    %743 = vmatpush.msra.mxu0 %v298
    %744 = vmatpush.msra.mxu0 %v297
    %745 = vmatpush.msra.mxu0 %v296
    %746 = vmatpush.msra.mxu0 %v295
    %747 = vmatmul.f32.gmra.mxu0 %v686
    %v748 = vpop.f32.mrf.mxu0
    %v749 = vadd.f32 0.0, %v748
    %750 = vdwg.mxu0
    %v752 = vrot.slane %v749, 2
    %v754 = vadd.f32 %v293, %v752
    %v755 = vtanh.pop %v754
    %v757 = vrot.slane %v730, 2
    %v759 = vrot.slane %v755, 6
    %v760 = vrot.slane %v757, 6
    %763 = vmatpush.msra.mxu0 %v326
    %764 = vmatpush.msra.mxu0 %v325
    %765 = vmatpush.msra.mxu0 %v324
    %766 = vmatpush.msra.mxu0 %v323
    %767 = vmatpush.msra.mxu0 %v322
    %768 = vmatpush.msra.mxu0 %v321
    %769 = vmatpush.msra.mxu0 %v320
    %770 = vmatpush.msra.mxu0 %v319
    %771 = vmatpush.msra.mxu0 %v318
    %772 = vmatpush.msra.mxu0 %v317
    %773 = vmatpush.msra.mxu0 %v316
    %774 = vmatpush.msra.mxu0 %v315
    %775 = vmatpush.msra.mxu0 %v314
    %776 = vmatpush.msra.mxu0 %v313
    %777 = vmatpush.msra.mxu0 %v312
    %778 = vmatpush.msra.mxu0 %v311
    %779 = vmatmul.f32.gmra.mxu0 %v759
    %v780 = vpop.f32.mrf.mxu0
    %v781 = vadd.f32 %v343, %v780
    %782 = vdwg.mxu0
    %783 = vmatpush.msra.mxu0 %v342
    %784 = vmatpush.msra.mxu0 %v341
    %785 = vmatpush.msra.mxu0 %v340
    %786 = vmatpush.msra.mxu0 %v339
    %787 = vmatpush.msra.mxu0 %v338
    %788 = vmatpush.msra.mxu0 %v337
    %789 = vmatpush.msra.mxu0 %v336
    %790 = vmatpush.msra.mxu0 %v335
    %791 = vmatpush.msra.mxu0 %v334
    %792 = vmatpush.msra.mxu0 %v333
    %793 = vmatpush.msra.mxu0 %v332
    %794 = vmatpush.msra.mxu0 %v331
    %795 = vmatpush.msra.mxu0 %v330
    %796 = vmatpush.msra.mxu0 %v329
    %797 = vmatpush.msra.mxu0 %v328
    %798 = vmatpush.msra.mxu0 %v327
    %799 = vmatmul.f32.gmra.mxu0 %v760
    %v800 = vpop.f32.mrf.mxu0
    %v801 = vadd.f32 %v781, %v800
    %802 = vdwg.mxu0
    %v803 = vtanh.pop %v801
    %804 = vmatpush.msra.mxu0 %v310
    %805 = vmatpush.msra.mxu0 %v309
    %806 = vmatpush.msra.mxu0 %v308
    %807 = vmatpush.msra.mxu0 %v307
    %808 = vmatpush.msra.mxu0 %v306
    %809 = vmatpush.msra.mxu0 %v305
    %810 = vmatpush.msra.mxu0 %v304
    %811 = vmatpush.msra.mxu0 %v303
    %812 = vmatpush.msra.mxu0 %v302
    %813 = vmatpush.msra.mxu0 %v301
    %814 = vmatpush.msra.mxu0 %v300
    %815 = vmatpush.msra.mxu0 %v299
    %816 = vmatpush.msra.mxu0 %v298
    %817 = vmatpush.msra.mxu0 %v297
    %818 = vmatpush.msra.mxu0 %v296
    %819 = vmatpush.msra.mxu0 %v295
    %820 = vmatmul.f32.gmra.mxu0 %v759
    %v821 = vpop.f32.mrf.mxu0
    %v822 = vadd.f32 0.0, %v821
    %823 = vdwg.mxu0
    %v825 = vrot.slane %v822, 1
    %v827 = vadd.f32 %v293, %v825
    %v828 = vtanh.pop %v827
    %v830 = vrot.slane %v803, 1
    %v832 = vrot.slane %v828, 7
    %v833 = vrot.slane %v830, 7
    %836 = vmatpush.msra.mxu0 %v326
    %837 = vmatpush.msra.mxu0 %v325
    %838 = vmatpush.msra.mxu0 %v324
    %839 = vmatpush.msra.mxu0 %v323
    %840 = vmatpush.msra.mxu0 %v322
    %841 = vmatpush.msra.mxu0 %v321
    %842 = vmatpush.msra.mxu0 %v320
    %843 = vmatpush.msra.mxu0 %v319
    %844 = vmatpush.msra.mxu0 %v318
    %845 = vmatpush.msra.mxu0 %v317
    %846 = vmatpush.msra.mxu0 %v316
    %847 = vmatpush.msra.mxu0 %v315
    %848 = vmatpush.msra.mxu0 %v314
    %849 = vmatpush.msra.mxu0 %v313
    %850 = vmatpush.msra.mxu0 %v312
    %851 = vmatpush.msra.mxu0 %v311
    %852 = vmatmul.f32.gmra.mxu0 %v832
    %v853 = vpop.f32.mrf.mxu0
    %v854 = vadd.f32 %v343, %v853
    %855 = vdwg.mxu0
    %856 = vmatpush.msra.mxu0 %v342
    %857 = vmatpush.msra.mxu0 %v341
    %858 = vmatpush.msra.mxu0 %v340
    %859 = vmatpush.msra.mxu0 %v339
    %860 = vmatpush.msra.mxu0 %v338
    %861 = vmatpush.msra.mxu0 %v337
    %862 = vmatpush.msra.mxu0 %v336
    %863 = vmatpush.msra.mxu0 %v335
    %864 = vmatpush.msra.mxu0 %v334
    %865 = vmatpush.msra.mxu0 %v333
    %866 = vmatpush.msra.mxu0 %v332
    %867 = vmatpush.msra.mxu0 %v331
    %868 = vmatpush.msra.mxu0 %v330
    %869 = vmatpush.msra.mxu0 %v329
    %870 = vmatpush.msra.mxu0 %v328
    %871 = vmatpush.msra.mxu0 %v327
    %872 = vmatmul.f32.gmra.mxu0 %v833
    %v873 = vpop.f32.mrf.mxu0
    %v874 = vadd.f32 %v854, %v873
    %875 = vdwg.mxu0
    %v876 = vtanh.pop %v874
    %v877 = vld [vmem:[#allocation10] sm:$0xff]
    %v878 = vld [vmem:[#allocation10 + $0x8] sm:$0xff]
    %v879 = vld [vmem:[#allocation10 + $0x10] sm:$0xff]
    %v880 = vld [vmem:[#allocation10 + $0x18] sm:$0xff]
    %v881 = vld [vmem:[#allocation10 + $0x20] sm:$0xff]
    %v882 = vld [vmem:[#allocation10 + $0x28] sm:$0xff]
    %v883 = vld [vmem:[#allocation10 + $0x30] sm:$0xff]
    %v884 = vld [vmem:[#allocation10 + $0x38] sm:$0xff]
    %v885 = vld [vmem:[#allocation10 + $0x40] sm:$0xff]
    %v886 = vld [vmem:[#allocation10 + $0x48] sm:$0xff]
    %v887 = vld [vmem:[#allocation10 + $0x50] sm:$0xff]
    %v888 = vld [vmem:[#allocation10 + $0x58] sm:$0xff]
    %v889 = vld [vmem:[#allocation10 + $0x60] sm:$0xff]
    %v890 = vld [vmem:[#allocation10 + $0x68] sm:$0xff]
    %v891 = vld [vmem:[#allocation10 + $0x70] sm:$0xff]
    %v892 = vld [vmem:[#allocation10 + $0x78] sm:$0xff]
    %v893 = vld [vmem:[%s7] sm:$0x1]
    %894 = vmatpush.msra.mxu0 %v892
    %895 = vmatpush.msra.mxu0 %v891
    %896 = vmatpush.msra.mxu0 %v890
    %897 = vmatpush.msra.mxu0 %v889
    %898 = vmatpush.msra.mxu0 %v888
    %899 = vmatpush.msra.mxu0 %v887
    %900 = vmatpush.msra.mxu0 %v886
    %901 = vmatpush.msra.mxu0 %v885
    %902 = vmatpush.msra.mxu0 %v884
    %903 = vmatpush.msra.mxu0 %v883
    %904 = vmatpush.msra.mxu0 %v882
    %905 = vmatpush.msra.mxu0 %v881
    %906 = vmatpush.msra.mxu0 %v880
    %907 = vmatpush.msra.mxu0 %v879
    %908 = vmatpush.msra.mxu0 %v878
    %909 = vmatpush.msra.mxu0 %v877
    %910 = vmatmul.f32.gmra.mxu0 %v876
    %v911 = vpop.f32.mrf.mxu0
    %v912 = vadd.f32 %v893, %v911
    %913 = vdwg.mxu0
    %v916 = vrot.slane %v912, 7
    %vm917 = vcmask 1040384
    %v918 = vsel %vm917, %v876, %v916
    %v920 = vlaneseq
    %vm921 = vcmp.ge.s32.totalorder %v920, 0
    %vm922 = vcmp.lt.s32.totalorder %v920, 256
    %vm923 = vmand %vm921, %vm922
    %924 = vst.msk [vmem:[#allocation11] sm:$0x3] %vm923, %v918
    // Predicated region
    $region54: #{tpu_custom_call.1} parent=1 // pred_check
      _
    $region55: #{tpu_custom_call.1} parent=1 // pred_check_branch
      %926 = sbr.rel (0) target = $region57
    $region56: #{tpu_custom_call.1} parent=1 // pred_region
      %928 = vsyncadd [#allocation4], 0
      %s930 = sshll.u32 [#allocation11], 4
      %s931 = int_to_ptr.vmem [resolvable:$true] %s930
      %s932 = sshll.u32 %s8, 4
      %s933 = int_to_ptr.hbm [resolvable:$true] %s932
      %935 = dma.vmem_to_hbm [thread:$0]  %s931, 32, %s933, [#allocation4]
    $region57: #{tpu_custom_call.1} parent=1 // pred_fallthru
      _
    // Predicated region
    $region58: #{tpu_custom_call.1} parent=1 // pred_check
      _
    $region59: #{tpu_custom_call.1} parent=1 // pred_check_branch
      %937 = sbr.rel (0) target = $region61
    $region60: #{tpu_custom_call.1} parent=1 // pred_region
      %939 = dma.done [#allocation4], 32
    $region61: #{tpu_custom_call.1} parent=1 // pred_fallthru
      _
    %940 = vsyncpa [#allocation3], 1
    %941 = vsyncpa [#allocation6], 1
    %942 = vsyncpa [#allocation9], 1
    %943 = vsyncpa [#allocation4], 1

</llo_original>
